<compile_context>
chip_gen: v6e
topology: v6e:2x2x1
jax: 0.10.0
libtpu: 0.0.40
codegen_flags: <defaults>
</compile_context>

<pallas_src>
import functools

import jax
import jax.numpy as jnp
from jax.experimental import pallas as pl
from jax.experimental.pallas import tpu as pltpu


def _round_up(x, m):
    return ((x + m - 1) // m) * m


def _vmem_capacity_bytes():
    """Per-core VMEM capacity (falls back to the smallest, v7x's 64 MiB)."""
    try:
        info = pltpu.get_tpu_info()
        cap = getattr(info, "vmem_capacity_bytes", None)
        if cap:
            return int(cap)
    except Exception:
        pass
    return 64 * 1024 * 1024


def _pick_row_tile(n, f_in, f_pad, agg_first, vmem_limit):
    """Largest adj row tile TM whose full double-buffered working set
    (f32 adj tile + f32 seq block + f32 out tile + params [+ fts scratch])
    fits under `vmem_limit` with headroom for compiler scratch."""
    if n <= 256:
        return _round_up(max(n, 8), 8)            # one row tile per batch
    n_lane = _round_up(n, 128)                    # adj last-dim lane padding
    n_sub = _round_up(n, 8)
    f_in_lane = max(_round_up(f_in, 128), 128)    # seq last-dim lane padding
    fixed = 2 * n_sub * f_in_lane * 4             # seq f32 block, double-buffered
    fixed += f_in * f_pad * 2 + f_pad * 4         # weight bf16 + bias f32
    if not agg_first:
        fixed += n_sub * f_pad * 2                # fts scratch (bf16, single buffer)
    budget = vmem_limit - fixed - (2 << 20)

    def working_set(tm):                          # adj + out tiles, double-buffered
        return 2 * tm * n_lane * 4 + 2 * tm * f_pad * 4

    cap_tm = _round_up(n, 8)
    for tm in (1024, 512, 256, 128, 64, 32):
        if tm <= cap_tm and working_set(tm) <= budget:
            return tm
    # TODO(synk): for huge N the right fix is a third "arbitrary" grid axis tiling
    # the N-contraction with an f32 accumulator; not needed at these sizes.
    return 32


def _gcn_kernel(seq_ref, adj_ref, w_ref, b_ref, alpha_ref, out_ref, *scratch,
                agg_first):
    # seq_ref:   (1, N, F_in)   native dtype (re-DMA'd only when the batch changes)
    # adj_ref:   (1, TM, N)     native dtype, cast to bf16 in-kernel
    # w_ref:     (F_in, F_pad)  bf16 (tiny, columns pre-padded to a multiple of 128)
    # b_ref:     (1, F_pad)     f32
    # alpha_ref: (1, 1)         f32 in SMEM (PReLU slope)
    # out_ref:   (1, TM, F_pad) f32, lane-dense
    adj = adj_ref[0].astype(jnp.bfloat16)                       # (TM, N)
    w = w_ref[...]                                              # (F_in, F_pad)

    if agg_first:
        # (adj @ seq) @ W : the long N-contraction runs at the narrower width F_in.
        seq = seq_ref[0].astype(jnp.bfloat16)                   # (N, F_in)
        agg = jnp.dot(adj, seq, preferred_element_type=jnp.float32)   # (TM, F_in)
        out = jnp.dot(agg.astype(jnp.bfloat16), w,
                      preferred_element_type=jnp.float32)              # (TM, F_pad)
    else:
        # adj @ (seq @ W), with seq @ W computed once per batch into VMEM scratch.
        fts_ref = scratch[0]                                    # (N, F_pad) bf16

        @pl.when(pl.program_id(1) == 0)
        def _():
            seq = seq_ref[0].astype(jnp.bfloat16)               # (N, F_in)
            fts_ref[...] = jnp.dot(
                seq, w, preferred_element_type=jnp.float32).astype(jnp.bfloat16)

        out = jnp.dot(adj, fts_ref[...],
                      preferred_element_type=jnp.float32)               # (TM, F_pad)

    out = out + b_ref[...]                                      # bias broadcast
    alpha = alpha_ref[0, 0]
    out_ref[0] = jnp.where(out > 0, out, alpha * out).astype(out_ref.dtype)


def gcn_forward(seq, adj, weight, bias, alpha, *, keep_padded_out=False):
    """seq: (B, N, F_in), adj: (B, N, N), weight: (F_in, F_out), bias: (F_out,),
    alpha: scalar PReLU slope.  Returns (B, N, F_out) f32 (or (B, N, F_pad) if
    keep_padded_out=True, avoiding the post-kernel slice pass)."""
    B, N, F_in = seq.shape
    F_out = weight.shape[1]
    F_pad = _round_up(F_out, 128)              # lane-dense output / weight columns
    agg_first = F_in <= F_pad                  # cheaper ordering for the N-contraction

    vmem_limit = min(int(_vmem_capacity_bytes() * 0.75), 96 * 1024 * 1024)
    TM = _pick_row_tile(N, F_in, F_pad, agg_first, vmem_limit)
    num_row_tiles = pl.cdiv(N, TM)

    # Tiny params only: weight in bf16 (MXU-native), bias f32, alpha scalar in SMEM.
    w_pad = jnp.zeros((F_in, F_pad), jnp.bfloat16).at[:, :F_out].set(
        weight.astype(jnp.bfloat16))
    b_pad = jnp.zeros((1, F_pad), jnp.float32).at[:, :F_out].set(
        bias.astype(jnp.float32))
    alpha2d = jnp.asarray(alpha, jnp.float32).reshape(1, 1)

    if agg_first:
        flops = 2 * B * N * N * F_in + 2 * B * N * F_in * F_pad
        scratch_shapes = []
        dims = ("parallel", "parallel")
    else:
        flops = 2 * B * N * F_in * F_pad + 2 * B * N * N * F_pad
        scratch_shapes = [pltpu.VMEM((N, F_pad), jnp.bfloat16)]
        dims = ("parallel", "arbitrary")       # fts scratch carried across row tiles

    bytes_accessed = (adj.size * adj.dtype.itemsize
                      + seq.size * seq.dtype.itemsize
                      + w_pad.size * 2 + b_pad.size * 4
                      + B * N * F_pad * 4)

    kernel = functools.partial(_gcn_kernel, agg_first=agg_first)

    out = pl.pallas_call(
        kernel,
        out_shape=jax.ShapeDtypeStruct((B, N, F_pad), jnp.float32),
        grid=(B, num_row_tiles),
        in_specs=[
            pl.BlockSpec((1, N, F_in), lambda b, r: (b, 0, 0)),   # seq (per-batch)
            pl.BlockSpec((1, TM, N), lambda b, r: (b, r, 0)),     # adj row tile
            pl.BlockSpec((F_in, F_pad), lambda b, r: (0, 0)),     # weight
            pl.BlockSpec((1, F_pad), lambda b, r: (0, 0)),        # bias
            pl.BlockSpec(memory_space=pltpu.MemorySpace.SMEM),    # alpha
        ],
        out_specs=pl.BlockSpec((1, TM, F_pad), lambda b, r: (b, r, 0)),
        scratch_shapes=scratch_shapes,
        compiler_params=pltpu.CompilerParams(
            dimension_semantics=dims,
            vmem_limit_bytes=vmem_limit),
        cost_estimate=pl.CostEstimate(
            flops=flops, transcendentals=0, bytes_accessed=bytes_accessed),
    )(seq, adj, w_pad, b_pad, alpha2d)

    if keep_padded_out or F_pad == F_out:
        return out
    return out[..., :F_out]


# TODO(synk): torch.spmm sparse branch (sparse=True) has no clean dense-BlockSpec
# equivalent; only the dense bmm path is implemented here.


if __name__ == "__main__":
    # Small shapes consistent with the GCN module's dense forward.
    B, N, F_in, F_out = 2, 16, 32, 64

    key = jax.random.PRNGKey(0)
    k_seq, k_adj, k_w = jax.random.split(key, 3)

    seq = jax.random.normal(k_seq, (B, N, F_in), dtype=jnp.float32)
    # normalized-adjacency-like values in [0, 1)
    adj = jax.random.uniform(k_adj, (B, N, N), dtype=jnp.float32)

    # Deterministic params mirroring the module's __init__:
    #   Linear weight -> xavier_uniform_, bias(out_ft) -> 0.0, PReLU slope 0.25.
    limit = (6.0 / (F_in + F_out)) ** 0.5
    weight = jax.random.uniform(
        k_w, (F_in, F_out), dtype=jnp.float32, minval=-limit, maxval=limit)
    bias = jnp.zeros((F_out,), jnp.float32)
    alpha = jnp.float32(0.25)

    out = gcn_forward(seq, adj, weight, bias, alpha)
    jax.block_until_ready(out)
    assert out.shape == (B, N, F_out)

    # Reference mirroring the kernel's bf16 MXU inputs / f32 accumulation
    # (agg_first path is taken for these shapes since F_in <= round_up(F_out,128)).
    hi = jax.lax.Precision.HIGHEST
    f32 = lambda x: x.astype(jnp.float32)
    bf = lambda x: x.astype(jnp.bfloat16)
    adj_q, seq_q, w_q = f32(bf(adj)), f32(bf(seq)), f32(bf(weight))
    agg = jnp.einsum("bnm,bmf->bnf", adj_q, seq_q, precision=hi)
    ref = jnp.einsum("bnf,fo->bno", f32(bf(agg)), w_q, precision=hi) + bias
    ref = jnp.where(ref > 0, ref, alpha * ref)
    assert jnp.allclose(out, ref, atol=2e-3, rtol=2e-3), \
        float(jnp.max(jnp.abs(out - ref)))

    # Loose sanity check against exact f32 math of the torch forward.
    fts = jnp.einsum("bnf,fo->bno", seq, weight, precision=hi)
    exact = jnp.einsum("bnm,bmo->bno", adj, fts, precision=hi) + bias
    exact = jnp.where(exact > 0, exact, alpha * exact)
    assert jnp.allclose(out, exact, atol=1e-1, rtol=1e-1)

    print("KERNEL_OK")
</pallas_src>

<mosaic_0001>
module attributes {stable_mosaic.version = 11 : i64} {
  func.func @_gcn_kernel(%arg0: i32, %arg1: i32, %arg2: memref<1x16x32xf32, #tpu.memory_space<vmem>>, %arg3: memref<1x16x16xf32, #tpu.memory_space<vmem>>, %arg4: memref<32x128xbf16, #tpu.memory_space<vmem>>, %arg5: memref<1x128xf32, #tpu.memory_space<vmem>>, %arg6: memref<1x1xf32, #tpu.memory_space<smem>>, %arg7: memref<1x16x128xf32, #tpu.memory_space<vmem>>) attributes {dimension_semantics = [#tpu.dimension_semantics<parallel>, #tpu.dimension_semantics<parallel>], iteration_bounds = array<i64: 2, 1>, scalar_prefetch = 0 : i64, scratch_operands = 0 : i64, tpu.core_type = #tpu.core_type<tc>, window_params = [{transform_indices = @transform_0, window_bounds = array<i64: 1, 16, 32>}, {transform_indices = @transform_1, window_bounds = array<i64: 1, 16, 16>}, {pipeline_mode = #tpu.pipeline_mode<synchronous>, transform_indices = @transform_2, window_bounds = array<i64: 32, 128>}, {pipeline_mode = #tpu.pipeline_mode<synchronous>, transform_indices = @transform_3, window_bounds = array<i64: 1, 128>}, {transform_indices = @transform_4, window_bounds = array<i64: 1, 1>}, {transform_indices = @transform_5, window_bounds = array<i64: 1, 16, 128>}]} {
    %c0 = arith.constant 0 : index
    %c0_0 = arith.constant 0 : index
    %c0_1 = arith.constant 0 : index
    %0 = vector.load %arg3[%c0, %c0_0, %c0_1] : memref<1x16x16xf32, #tpu.memory_space<vmem>>, vector<1x16x16xf32>
    %1 = vector.shape_cast %0 : vector<1x16x16xf32> to vector<16x16xf32>
    %2 = arith.truncf %1 : vector<16x16xf32> to vector<16x16xbf16>
    %c0_2 = arith.constant 0 : index
    %c0_3 = arith.constant 0 : index
    %3 = vector.load %arg4[%c0_2, %c0_3] : memref<32x128xbf16, #tpu.memory_space<vmem>>, vector<32x128xbf16>
    %c0_4 = arith.constant 0 : index
    %c0_5 = arith.constant 0 : index
    %c0_6 = arith.constant 0 : index
    %4 = vector.load %arg2[%c0_4, %c0_5, %c0_6] : memref<1x16x32xf32, #tpu.memory_space<vmem>>, vector<1x16x32xf32>
    %5 = vector.shape_cast %4 : vector<1x16x32xf32> to vector<16x32xf32>
    %6 = arith.truncf %5 : vector<16x32xf32> to vector<16x32xbf16>
    %cst = arith.constant dense<0.000000e+00> : vector<16x32xf32>
    %7 = tpu.matmul %2, %6, %cst {dimension_numbers = #tpu.dot_dimension_numbers<[1], [0], [0], [1], [0, 0, 1, 1], [], []>} : vector<16x16xbf16>, vector<16x32xbf16>, vector<16x32xf32> -> vector<16x32xf32>
    %8 = arith.truncf %7 : vector<16x32xf32> to vector<16x32xbf16>
    %cst_7 = arith.constant dense<0.000000e+00> : vector<16x128xf32>
    %9 = tpu.matmul %8, %3, %cst_7 {dimension_numbers = #tpu.dot_dimension_numbers<[1], [0], [0], [1], [0, 0, 1, 1], [], []>} : vector<16x32xbf16>, vector<32x128xbf16>, vector<16x128xf32> -> vector<16x128xf32>
    %c0_8 = arith.constant 0 : index
    %c0_9 = arith.constant 0 : index
    %10 = vector.load %arg5[%c0_8, %c0_9] : memref<1x128xf32, #tpu.memory_space<vmem>>, vector<1x128xf32>
    %11 = vector.broadcast %10 : vector<1x128xf32> to vector<16x128xf32>
    %12 = arith.addf %9, %11 : vector<16x128xf32>
    %c0_10 = arith.constant 0 : index
    %c0_11 = arith.constant 0 : index
    %13 = memref.load %arg6[%c0_10, %c0_11] : memref<1x1xf32, #tpu.memory_space<smem>>
    %cst_12 = arith.constant 0.000000e+00 : f32
    %14 = vector.broadcast %cst_12 : f32 to vector<16x128xf32>
    %15 = arith.cmpf ogt, %12, %14 : vector<16x128xf32>
    %16 = vector.broadcast %13 : f32 to vector<16x128xf32>
    %17 = arith.mulf %16, %12 : vector<16x128xf32>
    %18 = arith.select %15, %12, %17 : vector<16x128xi1>, vector<16x128xf32>
    %c0_13 = arith.constant 0 : index
    %c0_14 = arith.constant 0 : index
    %c0_15 = arith.constant 0 : index
    %19 = vector.load %arg7[%c0_13, %c0_14, %c0_15] : memref<1x16x128xf32, #tpu.memory_space<vmem>>, vector<1x16x128xf32>
    %20 = vector.shape_cast %19 : vector<1x16x128xf32> to vector<16x128xf32>
    %21 = vector.shape_cast %18 : vector<16x128xf32> to vector<1x16x128xf32>
    tpu.vector_store %arg7[%c0_13, %c0_14, %c0_15], %21 {strides = array<i32>} : memref<1x16x128xf32, #tpu.memory_space<vmem>>, vector<1x16x128xf32>,
    return
  }
  func.func @transform_0(%arg0: i32, %arg1: i32) -> (i32, i32, i32) {
    %c0_i32 = arith.constant 0 : i32
    %c0_i32_0 = arith.constant 0 : i32
    %c0_i32_1 = arith.constant 0 : i32
    return %arg0, %c0_i32, %c0_i32_0 : i32, i32, i32
  }
  func.func @transform_1(%arg0: i32, %arg1: i32) -> (i32, i32, i32) {
    %c0_i32 = arith.constant 0 : i32
    %c0_i32_0 = arith.constant 0 : i32
    return %arg0, %arg1, %c0_i32 : i32, i32, i32
  }
  func.func @transform_2(%arg0: i32, %arg1: i32) -> (i32, i32) {
    %c0_i32 = arith.constant 0 : i32
    %c0_i32_0 = arith.constant 0 : i32
    %c0_i32_1 = arith.constant 0 : i32
    return %c0_i32, %c0_i32_0 : i32, i32
  }
  func.func @transform_3(%arg0: i32, %arg1: i32) -> (i32, i32) {
    %c0_i32 = arith.constant 0 : i32
    %c0_i32_0 = arith.constant 0 : i32
    %c0_i32_1 = arith.constant 0 : i32
    return %c0_i32, %c0_i32_0 : i32, i32
  }
  func.func @transform_4(%arg0: i32, %arg1: i32) -> (i32, i32) {
    %c0_i32 = arith.constant 0 : i32
    %c0_i32_0 = arith.constant 0 : i32
    %c0_i32_1 = arith.constant 0 : i32
    return %c0_i32, %c0_i32_0 : i32, i32
  }
  func.func @transform_5(%arg0: i32, %arg1: i32) -> (i32, i32, i32) {
    %c0_i32 = arith.constant 0 : i32
    %c0_i32_0 = arith.constant 0 : i32
    return %arg0, %arg1, %c0_i32 : i32, i32, i32
  }
}

</mosaic_0001>

<llo_original>
// kernel: tpu_custom_call.1
$region0: #{tpu_custom_call.1}
  #allocation0 [shape = 'u32[]', space=smem, size = 0x4, offset = 0x4, fixed_abs, tag = 'smem constant byte address 0x4 - core index']
  #allocation1 [shape = 'u32[144,128]{1,0:T(1,128)}', space=vmem, size = 0x12000, scoped, tag = 'internal scratch']
  #allocation2 [shape = 'f32[1,1]{1,0:T(1,128)S(6)}', space=smem, size = 0x200, scoped, tag = 'scoped memory for tpu_custom_call.1']
  %s0 = inlined_call_operand.hbm [shape: f32[2,16,32], index: 0, kind: input, shape index: {}]
  %s1 = inlined_call_operand.hbm [shape: f32[2,16,16], index: 1, kind: input, shape index: {}]
  %s2 = inlined_call_operand.hbm [shape: bf16[32,128], index: 2, kind: input, shape index: {}]
  %s3 = inlined_call_operand.vmem [shape: f32[1,128], index: 3, kind: input, shape index: {}]
  %s4 = inlined_call_operand.<no memory space> [shape: f32[1,1], index: 4, kind: input, shape index: {}]
  %s5 = inlined_call_operand.hbm [shape: f32[2,16,128], index: 5, kind: output, shape index: {}]
  %s6 = sld [smem:[#allocation0]]
  $region65: #{tpu_custom_call.1} parent=0
    _
  %s8 = ssub.s32 1, %s6
  %s9 = scalar_select 0, %s8, %s6
  %10 = sst [smem:[#allocation2]] %s4
  $region1: #{tpu_custom_call.1} parent=0
    #allocation3 [shape = 'u8[16384]{0}', space=vmem, size = 0x4000, scoped, tag = 'input window, operand 0']
    #allocation4 [shape = 's32[2]{0}', space=sflag, size = 0x8, scoped, tag = 'scoped memory for tpu_custom_call.1']
    #allocation5 [shape = 's32[2]{0}', space=sflag, size = 0x8, scoped, tag = 'scoped memory for tpu_custom_call.1']
    #allocation6 [shape = 'u8[16384]{0}', space=vmem, size = 0x4000, scoped, tag = 'input window, operand 1']
    #allocation7 [shape = 's32[2]{0}', space=sflag, size = 0x8, scoped, tag = 'scoped memory for tpu_custom_call.1']
    #allocation8 [shape = 'u8[8192]{0}', space=vmem, size = 0x2000, scoped, tag = 'input window, operand 2, single buffered']
    #allocation9 [shape = 'u8[16384]{0}', space=vmem, size = 0x4000, scoped, tag = 'output window, operand 0']
    %11 = vsyncpa [#allocation4], 0
    %s12 = scalar_lea.sflag [#allocation4], 1
    %13 = vsyncpa %s12, 0
    %14 = vsyncpa [#allocation7], 0
    %s15 = scalar_lea.sflag [#allocation7], 1
    %16 = vsyncpa %s15, 0
    %17 = vsyncpa [#allocation5], 0
    %s18 = scalar_lea.sflag [#allocation5], 1
    %19 = vsyncpa %s18, 0
    loop: start=0, step=1, limit=4
    $region2: #{tpu_custom_call.1} parent=1 // loop_pre_header
      _
    $region3: #{tpu_custom_call.1} parent=1 // loop_header
      %s21 = sphi 0, %s25
      %p22 = scmp.ge.s32.totalorder %s21, 4
      %s28 = sphi 0, %s40
      %s29 = sphi 0, %s36
      %s30 = sphi 0, %s28
      %s31 = sphi 0, %s29
      %s32 = sphi 0, %s30
      %s33 = sphi 0, %s31
      %s43 = sphi 0, %s45
      %s46 = sphi 0, %s43
      %s47 = sphi 0, %s46
      %s63 = sphi 0, %s47
      %s71 = sphi 0, %s73
      %s74 = sphi 0, %s71
      %s75 = sphi 0, %s74
      %s91 = sphi 0, %s75
      %s95 = sphi 0, %s95
      %s97 = sphi 0, %s95
      %s98 = sphi 0, %s97
      %s112 = sphi 0, %s98
      %s116 = sphi 0, %s116
      %s118 = sphi 0, %s116
      %s119 = sphi 0, %s118
      %s133 = sphi 0, %s119
      %s137 = sphi 0, %s137
      %s139 = sphi 0, %s137
      %s140 = sphi 0, %s139
      %s154 = sphi 0, %s140
      %s162 = sphi 0, %s164
      %s165 = sphi 0, %s162
      %s166 = sphi 0, %s165
      %s182 = sphi 0, %s166
    $region4: #{tpu_custom_call.1} parent=1 // loop_header_branch
      %24 = sbr.rel (%p22) target = $region8
    $region5: #{tpu_custom_call.1} parent=1 // loop_body
      %s26 = ssub.s32 %s21, 1
      %s27 = ssub.s32 %s21, 2
      %s34 = sadd.s32 1, %s29
      %p35 = scmp.ge.s32.totalorder %s34, 1
      %s36 = scalar_select %p35, 0, %s34
      %s37 = sadd.s32 1, %s28
      %s38 = scalar_select %p35, %s37, %s28
      %p39 = scmp.ge.s32.totalorder %s38, 2
      %s40 = scalar_select %p39, 0, %s38
      %s41 = ssub.s32 %s28, %s40
      %p42 = scmp.eq.s32.totalorder %s41, 0
      %s44 = sadd.s32 %s43, 1
      %s45 = scalar_select %p42, %s43, %s44
      %p48 = pneg %p42
      %p49 = scmp.eq.s32.totalorder %s21, 1
      %p50 = por %p48, %p49
      %p51 = scmp.ne.s32.totalorder %s43, %s46
      %p52 = scmp.eq.s32.totalorder %s21, 0
      %p53 = por %p51, %p52
      %p54 = scmp.ne.s32.totalorder %s43, %s46
      %p55 = scmp.eq.s32.totalorder %s26, 1
      %p56 = por %p54, %p55
      %p57 = scmp.ne.s32.totalorder %s46, %s47
      %p58 = scmp.eq.s32.totalorder %s26, 0
      %p59 = por %p57, %p58
      %p60 = scmp.ne.s32.totalorder %s46, %s47
      %p61 = scmp.eq.s32.totalorder %s27, 1
      %p62 = por %p60, %p61
      %p64 = scmp.ne.s32.totalorder %s47, %s63
      %p65 = scmp.eq.s32.totalorder %s27, 0
      %p66 = por %p64, %p65
      %s67 = ssub.s32 %s28, %s40
      %s68 = ssub.s32 %s29, %s36
      %s69 = sor.u32 %s67, %s68
      %p70 = scmp.eq.s32.totalorder %s69, 0
      %s72 = sadd.s32 %s71, 1
      %s73 = scalar_select %p70, %s71, %s72
      %p76 = pneg %p70
      %p77 = scmp.eq.s32.totalorder %s21, 1
      %p78 = por %p76, %p77
      %p79 = scmp.ne.s32.totalorder %s71, %s74
      %p80 = scmp.eq.s32.totalorder %s21, 0
      %p81 = por %p79, %p80
      %p82 = scmp.ne.s32.totalorder %s71, %s74
      %p83 = scmp.eq.s32.totalorder %s26, 1
      %p84 = por %p82, %p83
      %p85 = scmp.ne.s32.totalorder %s74, %s75
      %p86 = scmp.eq.s32.totalorder %s26, 0
      %p87 = por %p85, %p86
      %p88 = scmp.ne.s32.totalorder %s74, %s75
      %p89 = scmp.eq.s32.totalorder %s27, 1
      %p90 = por %p88, %p89
      %p92 = scmp.ne.s32.totalorder %s75, %s91
      %p93 = scmp.eq.s32.totalorder %s27, 0
      %p94 = por %p92, %p93
      %s96 = sadd.s32 %s95, 1
      %p99 = scmp.eq.s32.totalorder %s21, 1
      %p100 = scmp.ne.s32.totalorder %s95, %s97
      %p101 = scmp.eq.s32.totalorder %s21, 0
      %p102 = por %p100, %p101
      %p103 = scmp.ne.s32.totalorder %s95, %s97
      %p104 = scmp.eq.s32.totalorder %s26, 1
      %p105 = por %p103, %p104
      %p106 = scmp.ne.s32.totalorder %s97, %s98
      %p107 = scmp.eq.s32.totalorder %s26, 0
      %p108 = por %p106, %p107
      %p109 = scmp.ne.s32.totalorder %s97, %s98
      %p110 = scmp.eq.s32.totalorder %s27, 1
      %p111 = por %p109, %p110
      %p113 = scmp.ne.s32.totalorder %s98, %s112
      %p114 = scmp.eq.s32.totalorder %s27, 0
      %p115 = por %p113, %p114
      %s117 = sadd.s32 %s116, 1
      %p120 = scmp.eq.s32.totalorder %s21, 1
      %p121 = scmp.ne.s32.totalorder %s116, %s118
      %p122 = scmp.eq.s32.totalorder %s21, 0
      %p123 = por %p121, %p122
      %p124 = scmp.ne.s32.totalorder %s116, %s118
      %p125 = scmp.eq.s32.totalorder %s26, 1
      %p126 = por %p124, %p125
      %p127 = scmp.ne.s32.totalorder %s118, %s119
      %p128 = scmp.eq.s32.totalorder %s26, 0
      %p129 = por %p127, %p128
      %p130 = scmp.ne.s32.totalorder %s118, %s119
      %p131 = scmp.eq.s32.totalorder %s27, 1
      %p132 = por %p130, %p131
      %p134 = scmp.ne.s32.totalorder %s119, %s133
      %p135 = scmp.eq.s32.totalorder %s27, 0
      %p136 = por %p134, %p135
      %s138 = sadd.s32 %s137, 1
      %p141 = scmp.eq.s32.totalorder %s21, 1
      %p142 = scmp.ne.s32.totalorder %s137, %s139
      %p143 = scmp.eq.s32.totalorder %s21, 0
      %p144 = por %p142, %p143
      %p145 = scmp.ne.s32.totalorder %s137, %s139
      %p146 = scmp.eq.s32.totalorder %s26, 1
      %p147 = por %p145, %p146
      %p148 = scmp.ne.s32.totalorder %s139, %s140
      %p149 = scmp.eq.s32.totalorder %s26, 0
      %p150 = por %p148, %p149
      %p151 = scmp.ne.s32.totalorder %s139, %s140
      %p152 = scmp.eq.s32.totalorder %s27, 1
      %p153 = por %p151, %p152
      %p155 = scmp.ne.s32.totalorder %s140, %s154
      %p156 = scmp.eq.s32.totalorder %s27, 0
      %p157 = por %p155, %p156
      %s158 = ssub.s32 %s28, %s40
      %s159 = ssub.s32 %s29, %s36
      %s160 = sor.u32 %s158, %s159
      %p161 = scmp.eq.s32.totalorder %s160, 0
      %s163 = sadd.s32 %s162, 1
      %s164 = scalar_select %p161, %s162, %s163
      %p167 = pneg %p161
      %p168 = scmp.eq.s32.totalorder %s21, 1
      %p169 = por %p167, %p168
      %p170 = scmp.ne.s32.totalorder %s162, %s165
      %p171 = scmp.eq.s32.totalorder %s21, 0
      %p172 = por %p170, %p171
      %p173 = scmp.ne.s32.totalorder %s162, %s165
      %p174 = scmp.eq.s32.totalorder %s26, 1
      %p175 = por %p173, %p174
      %p176 = scmp.ne.s32.totalorder %s165, %s166
      %p177 = scmp.eq.s32.totalorder %s26, 0
      %p178 = por %p176, %p177
      %p179 = scmp.ne.s32.totalorder %s165, %s166
      %p180 = scmp.eq.s32.totalorder %s27, 1
      %p181 = por %p179, %p180
      %p183 = scmp.ne.s32.totalorder %s166, %s182
      %p184 = scmp.eq.s32.totalorder %s27, 0
      %p185 = por %p183, %p184
      %p186 = scmp.le.s32.totalorder 1, %s21
      %p187 = scmp.lt.s32.totalorder %s21, 3
      %p188 = pnand %p186, %p187
      %p189 = pneg %p188
      // Predicated region
      $region9: #{tpu_custom_call.1} parent=5 // pred_check
        _
      $region10: #{tpu_custom_call.1} parent=5 // pred_check_branch
        %191 = sbr.rel (%p188) target = $region12
      $region11: #{tpu_custom_call.1} parent=5 // pred_region
        %s192 = ssub.s32 %s21, 1
        // Predicated region
        $region13: #{tpu_custom_call.1} parent=11 // pred_check
          %p193 = pneg %p108
        $region14: #{tpu_custom_call.1} parent=11 // pred_check_branch
          %195 = sbr.rel (%p193) target = $region16
        $region15: #{tpu_custom_call.1} parent=11 // pred_region
          %s197 = ssub.s32 256, 256
          %198 = vsyncadd [#allocation7], %s197
          %s199 = sshll.u32 [#allocation8], 4
          %s200 = int_to_ptr.vmem [resolvable:$true] %s199
          %205 = dma.hbm_to_vmem [thread:$0]  %s2, 256, %s200, [#allocation7], 64, 64, 4
        $region16: #{tpu_custom_call.1} parent=11 // pred_fallthru
          _
        // Predicated region
        $region17: #{tpu_custom_call.1} parent=11 // pred_check
          %p206 = pneg %p129
        $region18: #{tpu_custom_call.1} parent=11 // pred_check_branch
          %208 = sbr.rel (%p206) target = $region20
        $region19: #{tpu_custom_call.1} parent=11 // pred_region
          _
        $region20: #{tpu_custom_call.1} parent=11 // pred_fallthru
          _
        // Predicated region
        $region21: #{tpu_custom_call.1} parent=11 // pred_check
          %p209 = pneg %p150
        $region22: #{tpu_custom_call.1} parent=11 // pred_check_branch
          %211 = sbr.rel (%p209) target = $region24
        $region23: #{tpu_custom_call.1} parent=11 // pred_region
          _
        $region24: #{tpu_custom_call.1} parent=11 // pred_fallthru
          _
      $region12: #{tpu_custom_call.1} parent=5 // pred_fallthru
        _
      %p212 = scmp.lt.s32.totalorder %s21, 2
      // Predicated region
      $region25: #{tpu_custom_call.1} parent=5 // pred_check
        %p213 = pneg %p212
      $region26: #{tpu_custom_call.1} parent=5 // pred_check_branch
        %215 = sbr.rel (%p213) target = $region28
      $region27: #{tpu_custom_call.1} parent=5 // pred_region
        // Predicated region
        $region29: #{tpu_custom_call.1} parent=27 // pred_check
          %p216 = pneg %p53
        $region30: #{tpu_custom_call.1} parent=27 // pred_check_branch
          %218 = sbr.rel (%p216) target = $region32
        $region31: #{tpu_custom_call.1} parent=27 // pred_region
          %s219 = sand.u32 %s43, 1
          %s220 = scalar_lea.sflag [#allocation4], %s219
          %s221 = sand.u32 %s43, 1
          %s222 = smul.addr %s221, 16
          %s223 = scalar_lea.vmem [#allocation3], %s222
          %s225 = ssub.s32 256, 256
          %226 = vsyncadd %s220, %s225
          %s227 = smul.addr %s28, 2
          %s228 = smul.addr %s227, 128
          %s229 = scalar_lea.hbm %s0, %s228
          %s230 = sshll.u32 %s223, 4
          %s231 = int_to_ptr.vmem [resolvable:$true] %s230
          %236 = dma.hbm_to_vmem [thread:$0]  %s229, 256, %s231, %s220, 128, 128, 8
        $region32: #{tpu_custom_call.1} parent=27 // pred_fallthru
          _
        // Predicated region
        $region33: #{tpu_custom_call.1} parent=27 // pred_check
          %p237 = pneg %p81
        $region34: #{tpu_custom_call.1} parent=27 // pred_check_branch
          %239 = sbr.rel (%p237) target = $region36
        $region35: #{tpu_custom_call.1} parent=27 // pred_region
          %s240 = sand.u32 %s21, 1
          %s241 = scalar_lea.sflag [#allocation7], %s240
          %s242 = sand.u32 %s71, 1
          %s243 = smul.addr %s242, 16
          %s244 = scalar_lea.vmem [#allocation6], %s243
          %s245 = smul.u32 2, %s29
          %s247 = ssub.s32 256, 256
          %248 = vsyncadd %s241, %s247
          %s249 = smul.addr %s28, 2
          %s250 = sadd.s32 %s245, %s249
          %s251 = smul.addr %s250, 128
          %s252 = scalar_lea.hbm %s1, %s251
          %s253 = sshll.u32 %s244, 4
          %s254 = int_to_ptr.vmem [resolvable:$true] %s253
          %259 = dma.hbm_to_vmem [thread:$0]  %s252, 256, %s254, %s241, 128, 128, 8
        $region36: #{tpu_custom_call.1} parent=27 // pred_fallthru
          _
      $region28: #{tpu_custom_call.1} parent=5 // pred_fallthru
        _
      %p260 = scmp.le.s32.totalorder 1, %s21
      %p261 = scmp.lt.s32.totalorder %s21, 3
      %p262 = pnand %p260, %p261
      %p263 = pneg %p262
      // Predicated region
      $region37: #{tpu_custom_call.1} parent=5 // pred_check
        _
      $region38: #{tpu_custom_call.1} parent=5 // pred_check_branch
        %265 = sbr.rel (%p262) target = $region40
      $region39: #{tpu_custom_call.1} parent=5 // pred_region
        %s266 = ssub.s32 %s21, 1
        %s267 = sand.u32 %s46, 1
        %s268 = scalar_lea.sflag [#allocation4], %s267
        %s269 = sand.u32 %s46, 1
        %s270 = smul.addr %s269, 16
        %s271 = scalar_lea.vmem [#allocation3], %s270
        // Predicated region
        $region41: #{tpu_custom_call.1} parent=39 // pred_check
          %p272 = pneg %p59
        $region42: #{tpu_custom_call.1} parent=39 // pred_check_branch
          %274 = sbr.rel (%p272) target = $region44
        $region43: #{tpu_custom_call.1} parent=39 // pred_region
          %275 = dma.done %s268, 256
        $region44: #{tpu_custom_call.1} parent=39 // pred_fallthru
          _
        %s276 = sand.u32 %s26, 1
        %s277 = scalar_lea.sflag [#allocation7], %s276
        %s278 = sand.u32 %s74, 1
        %s279 = smul.addr %s278, 16
        %s280 = scalar_lea.vmem [#allocation6], %s279
        // Predicated region
        $region45: #{tpu_custom_call.1} parent=39 // pred_check
          %p281 = pneg %p87
        $region46: #{tpu_custom_call.1} parent=39 // pred_check_branch
          %283 = sbr.rel (%p281) target = $region48
        $region47: #{tpu_custom_call.1} parent=39 // pred_region
          %284 = dma.done %s277, 256
        $region48: #{tpu_custom_call.1} parent=39 // pred_fallthru
          _
        // Predicated region
        $region49: #{tpu_custom_call.1} parent=39 // pred_check
          %p285 = pneg %p108
        $region50: #{tpu_custom_call.1} parent=39 // pred_check_branch
          %287 = sbr.rel (%p285) target = $region52
        $region51: #{tpu_custom_call.1} parent=39 // pred_region
          %288 = dma.done [#allocation7], 256
        $region52: #{tpu_custom_call.1} parent=39 // pred_fallthru
          _
        %s289 = sand.u32 %s46, 1
        %s290 = scalar_lea.sflag [#allocation4], %s289
        %s291 = sand.u32 %s46, 1
        %s292 = smul.addr %s291, 16
        %s293 = scalar_lea.vmem [#allocation3], %s292
        %p294 = pneg %p59
        %p295 = pneg %p56
        %s296 = sand.u32 %s26, 1
        %s297 = scalar_lea.sflag [#allocation7], %s296
        %s298 = sand.u32 %s74, 1
        %s299 = smul.addr %s298, 16
        %s300 = scalar_lea.vmem [#allocation6], %s299
        %p301 = pneg %p87
        %p302 = pneg %p84
        %p303 = pneg %p108
        %p304 = pneg %p105
        %p305 = pneg %p129
        %p306 = pneg %p126
        %p307 = pneg %p150
        %p308 = pneg %p147
        %p309 = pneg %p178
        %p310 = pneg %p175
        %s311 = sand.u32 %s165, 1
        %s312 = scalar_lea.sflag [#allocation5], %s311
        %s313 = sand.u32 %s165, 1
        %s314 = smul.addr %s313, 16
        %s315 = scalar_lea.vmem [#allocation9], %s314
        %s316 = smul.u32 2, %s31
        %s317 = smul.u32 2, %s31
        %v319 = vld [vmem:[%s280] sm:$0xff]
        %v320 = vld [vmem:[%s280 + $0x8] sm:$0xff]
        %v321 = vpack.c.bf16 %v320, %v319
        %v322 = vld [vmem:[#allocation8] sm:$0xf]
        %v323 = vld [vmem:[#allocation8 + $0x4] sm:$0xf]
        %v324 = vld [vmem:[#allocation8 + $0x8] sm:$0xf]
        %v325 = vld [vmem:[#allocation8 + $0xc] sm:$0xf]
        %v326 = vld [vmem:[%s271] sm:$0xff]
        %v327 = vld [vmem:[%s271 + $0x8] sm:$0xff]
        %v328 = vpack.c.bf16 %v327, %v326
        %vm329 = vcmask 130048
        %v331 = vsel %vm329, %v321, 0
        %333 = vmatprep.subr.bf16.mxu0 0
        %334 = vmatpush1.bf16.msra.mxu0 0
        %335 = vmatprep.subr.bf16.mxu0 0
        %336 = vmatpush1.bf16.msra.mxu0 0
        %337 = vmatprep.subr.bf16.mxu0 0
        %338 = vmatpush1.bf16.msra.mxu0 0
        %339 = vmatprep.subr.bf16.mxu0 0
        %340 = vmatpush1.bf16.msra.mxu0 0
        %341 = vmatprep.subr.bf16.mxu0 0
        %342 = vmatpush1.bf16.msra.mxu0 0
        %343 = vmatprep.subr.bf16.mxu0 0
        %344 = vmatpush1.bf16.msra.mxu0 0
        %345 = vmatprep.subr.bf16.mxu0 0
        %346 = vmatpush1.bf16.msra.mxu0 0
        %347 = vmatprep.subr.bf16.mxu0 0
        %348 = vmatpush1.bf16.msra.mxu0 %v328
        %349 = vmatprep.subr.bf16.mxu0 0
        %350 = vmatpush2.bf16.msra.mxu0 0
        %351 = vmatprep.subr.bf16.mxu0 0
        %352 = vmatpush2.bf16.msra.mxu0 0
        %353 = vmatprep.subr.bf16.mxu0 0
        %354 = vmatpush2.bf16.msra.mxu0 0
        %355 = vmatprep.subr.bf16.mxu0 0
        %356 = vmatpush2.bf16.msra.mxu0 0
        %357 = vmatprep.subr.bf16.mxu0 0
        %358 = vmatpush2.bf16.msra.mxu0 0
        %359 = vmatprep.subr.bf16.mxu0 0
        %360 = vmatpush2.bf16.msra.mxu0 0
        %361 = vmatprep.subr.bf16.mxu0 0
        %362 = vmatpush2.bf16.msra.mxu0 0
        %363 = vmatprep.subr.bf16.mxu0 0
        %364 = vmatpush2.bf16.msra.mxu0 0
        %365 = vmatprep.mubr.bf16.mxu0 0
        %366 = vmatmul.mubr.bf16.gmra.mxu0 %v331
        %v367 = vpop.f32.mrf.mxu0
        %v368 = vadd.f32 0.0, %v367
        %v369 = vpop.f32.mrf.mxu0
        %v370 = vpop.f32.mrf.mxu0
        %v371 = vadd.f32 0.0, %v370
        %v372 = vpop.f32.mrf.mxu0
        %373 = vdwg.mxu0
        %v374 = vpack.c.bf16 %v371, %v368
        %v375 = vld [vmem:[%s3] sm:$0x1]
        %v377 = vlaneseq
        %v378 = vshrl.u32 %v377, 7
        %v379 = vsub.s32 0, %v378
        %v380 = vrot.slane %v375, %v379
        %v386 = vunpack.c.l.b16 %v322
        %v387 = vunpack.c.l.b16 %v323
        %v388 = vunpack.c.l.b16 %v324
        %v389 = vunpack.c.l.b16 %v325
        %v390 = vpack.c.b16 %v387, %v386
        %v391 = vpack.c.b16 %v389, %v388
        %vm394 = vcmask 261120
        %v396 = vsel %vm394, %v374, 0
        %398 = vmatprep.subr.bf16.mxu0 0
        %399 = vmatpush1.bf16.msra.mxu0 0
        %400 = vmatprep.subr.bf16.mxu0 0
        %401 = vmatpush1.bf16.msra.mxu0 0
        %402 = vmatprep.subr.bf16.mxu0 0
        %403 = vmatpush1.bf16.msra.mxu0 0
        %404 = vmatprep.subr.bf16.mxu0 0
        %405 = vmatpush1.bf16.msra.mxu0 0
        %406 = vmatprep.subr.bf16.mxu0 0
        %407 = vmatpush1.bf16.msra.mxu0 0
        %408 = vmatprep.subr.bf16.mxu0 0
        %409 = vmatpush1.bf16.msra.mxu0 0
        %410 = vmatprep.subr.bf16.mxu0 0
        %411 = vmatpush1.bf16.msra.mxu0 %v391
        %412 = vmatprep.subr.bf16.mxu0 0
        %413 = vmatpush1.bf16.msra.mxu0 %v390
        %414 = vmatprep.subr.bf16.mxu0 0
        %415 = vmatpush2.bf16.msra.mxu0 0
        %416 = vmatprep.subr.bf16.mxu0 0
        %417 = vmatpush2.bf16.msra.mxu0 0
        %418 = vmatprep.subr.bf16.mxu0 0
        %419 = vmatpush2.bf16.msra.mxu0 0
        %420 = vmatprep.subr.bf16.mxu0 0
        %421 = vmatpush2.bf16.msra.mxu0 0
        %422 = vmatprep.subr.bf16.mxu0 0
        %423 = vmatpush2.bf16.msra.mxu0 0
        %424 = vmatprep.subr.bf16.mxu0 0
        %425 = vmatpush2.bf16.msra.mxu0 0
        %426 = vmatprep.subr.bf16.mxu0 0
        %427 = vmatpush2.bf16.msra.mxu0 0
        %428 = vmatprep.subr.bf16.mxu0 0
        %429 = vmatpush2.bf16.msra.mxu0 0
        %430 = vmatprep.mubr.bf16.mxu0 0
        %431 = vmatmul.mubr.bf16.gmra.mxu0 %v396
        %v432 = vpop.f32.mrf.mxu0
        %v433 = vadd.f32 %v380, %v432
        %v434 = vpop.f32.mrf.mxu0
        %v435 = vpop.f32.mrf.mxu0
        %v436 = vadd.f32 %v380, %v435
        %v437 = vpop.f32.mrf.mxu0
        %438 = vdwg.mxu0
        %s439 = sld [smem:[#allocation2]]
        %vm440 = vcmp.gt.f32.partialorder %v433, 0.0
        %vm441 = vcmp.gt.f32.partialorder %v436, 0.0
        %v442 = vstv %s439
        %v443 = vmul.f32 %v442, %v433
        %v444 = vmul.f32 %v442, %v436
        %v445 = vsel %vm440, %v433, %v443
        %v446 = vsel %vm441, %v436, %v444
        %447 = vst [vmem:[%s315] sm:$0xff] %v445
        %448 = vst [vmem:[%s315 + $0x8] sm:$0xff] %v446
        %s449 = sand.u32 %s165, 1
        %s450 = scalar_lea.sflag [#allocation5], %s449
        %s451 = sand.u32 %s165, 1
        %s452 = smul.addr %s451, 16
        %s453 = scalar_lea.vmem [#allocation9], %s452
        // Predicated region
        $region53: #{tpu_custom_call.1} parent=39 // pred_check
          %p454 = pneg %p175
        $region54: #{tpu_custom_call.1} parent=39 // pred_check_branch
          %456 = sbr.rel (%p454) target = $region56
        $region55: #{tpu_custom_call.1} parent=39 // pred_region
          %s457 = smul.u32 2, %s31
          %s459 = ssub.s32 256, 256
          %460 = vsyncadd %s450, %s459
          %s461 = smul.addr %s30, 2
          %s462 = sadd.s32 %s457, %s461
          %s463 = smul.addr %s462, 128
          %s464 = scalar_lea.hbm %s5, %s463
          %s465 = sshll.u32 %s453, 4
          %s466 = int_to_ptr.vmem [resolvable:$true] %s465
          %471 = dma.vmem_to_hbm [thread:$0]  %s466, 256, %s464, %s450, 128, 128, 8
        $region56: #{tpu_custom_call.1} parent=39 // pred_fallthru
          _
      $region40: #{tpu_custom_call.1} parent=5 // pred_fallthru
        _
      %p472 = scmp.le.s32.totalorder 2, %s21
      // Predicated region
      $region57: #{tpu_custom_call.1} parent=5 // pred_check
        %p473 = pneg %p472
      $region58: #{tpu_custom_call.1} parent=5 // pred_check_branch
        %475 = sbr.rel (%p473) target = $region60
      $region59: #{tpu_custom_call.1} parent=5 // pred_region
        %s476 = ssub.s32 %s21, 2
        // Predicated region
        $region61: #{tpu_custom_call.1} parent=59 // pred_check
          %p477 = pneg %p181
        $region62: #{tpu_custom_call.1} parent=59 // pred_check_branch
          %479 = sbr.rel (%p477) target = $region64
        $region63: #{tpu_custom_call.1} parent=59 // pred_region
          %s480 = sand.u32 %s166, 1
          %s481 = scalar_lea.sflag [#allocation5], %s480
          %s482 = sand.u32 %s166, 1
          %s483 = smul.addr %s482, 16
          %s484 = scalar_lea.vmem [#allocation9], %s483
          %485 = dma.done %s481, 256
        $region64: #{tpu_custom_call.1} parent=59 // pred_fallthru
          _
      $region60: #{tpu_custom_call.1} parent=5 // pred_fallthru
        _
    $region6: #{tpu_custom_call.1} parent=1 // loop_footer
      %s25 = sadd.s32 1, %s21
    $region7: #{tpu_custom_call.1} parent=1 // loop_footer_branch
      %20 = sbr.rel target = $region3
    $region8: #{tpu_custom_call.1} parent=1 // loop_exit
      _
    %486 = vsyncpa [#allocation4], 1
    %s487 = scalar_lea.sflag [#allocation4], 1
    %488 = vsyncpa %s487, 1
    %489 = vsyncpa [#allocation7], 1
    %s490 = scalar_lea.sflag [#allocation7], 1
    %491 = vsyncpa %s490, 1
    %492 = vsyncpa [#allocation5], 1
    %s493 = scalar_lea.sflag [#allocation5], 1
    %494 = vsyncpa %s493, 1

</llo_original>
